<compile_context>
chip_gen: v6e
topology: v6e:2x2x1
jax: 0.10.0
libtpu: 0.0.40
codegen_flags: <defaults>
</compile_context>

<pallas_src>
import functools
import math

import jax
import jax.numpy as jnp
from jax.experimental import pallas as pl
from jax.experimental.pallas import tpu as pltpu


# --------------------------------------------------------------------------- #
# helpers
# --------------------------------------------------------------------------- #
def _vmem_budget_bytes():
    """Scoped-VMEM budget with headroom (~48 MiB on v7x, ~96 MiB on v5e/v6e)."""
    cap = 64 * 1024 * 1024
    try:
        cap = int(pltpu.get_tpu_info().vmem_capacity_bytes)
    except Exception:
        pass
    return max(16 * 1024 * 1024, (cap * 3) // 4)


def _sublane_tile(dtype):
    """Native sublane tile: 8 for f32, 16 for bf16, 32 for int8/fp8."""
    return max(8, 32 // jnp.dtype(dtype).itemsize)


def _choose_pack(C, N, max_cp=512):
    """Lane-pack factor g so that (N, C) -> (N//g, g*C) is an exact, free reshape."""
    if C % 128 == 0:
        return 1
    g = 128 // math.gcd(C, 128)          # smallest g with (g*C) % 128 == 0 (Cp = lcm)
    if g * C <= max_cp and N % g == 0:
        return g
    best = 1                              # fallback: widen toward 128 lanes
    for cand in range(2, max(2, 128 // C + 1)):
        if N % cand == 0 and cand * C <= 256:
            best = cand
    return best


# --------------------------------------------------------------------------- #
# kernels
# --------------------------------------------------------------------------- #
def _fold_groups(st, g, c):
    """Fold the g lane-groups of every channel via circular lane rolls (XLU)."""
    if g == 1:
        return st
    cp = g * c
    acc = st
    if g & (g - 1) == 0:                  # power of two: log2(g) rolls
        shift = c
        while shift < cp:
            acc = acc + pltpu.roll(acc, shift, axis=1)
            shift *= 2
    else:
        for k in range(1, g):
            acc = acc + pltpu.roll(st, k * c, axis=1)
    return acc


def _stats_kernel(x_ref, stat_ref, *, np_valid, block_rows):
    """Per-block partial stats; tail rows of the edge block are masked (no padding)."""
    blk = pl.program_id(0)
    xb = x_ref[...].astype(jnp.float32)                          # (T, Cp)
    row = blk * block_rows + jax.lax.broadcasted_iota(jnp.int32, xb.shape, 0)
    xv = jnp.where(row < np_valid, xb, 0.0)
    s = jnp.sum(xv, axis=0, keepdims=True)
    sq = jnp.sum(xv * xv, axis=0, keepdims=True)
    stat_ref[...] = jnp.concatenate([s, sq], axis=0)             # (2, Cp)


def _norm_kernel(x_ref, scale_ref, shift_ref, o_ref):
    """y = x * scale + shift (per-channel affine pre-folded in the wrapper)."""
    xb = x_ref[...].astype(jnp.float32)
    o_ref[...] = (xb * scale_ref[...] + shift_ref[...]).astype(o_ref.dtype)


def _fused_kernel(x_ref, w_ref, b_ref, o_ref, xsave, stat,
                  *, n_samples, np_valid, block_rows, eps, g, c):
    """Two-phase fused BN: phase 0 streams tiles into VMEM + accumulates stats,
    phase 1 normalizes from the resident copy and streams output tiles.
    1 HBM read + 1 HBM write, pipelined."""
    phase = pl.program_id(0)
    blk = pl.program_id(1)

    @pl.when(phase == 0)
    def _():
        @pl.when(blk == 0)
        def _():
            stat[...] = jnp.zeros_like(stat)
        xb = x_ref[...].astype(jnp.float32)                      # (T, Cp)
        row = blk * block_rows + jax.lax.broadcasted_iota(jnp.int32, xb.shape, 0)
        xv = jnp.where(row < np_valid, xb, 0.0)
        s = jnp.sum(xv, axis=0, keepdims=True)
        sq = jnp.sum(xv * xv, axis=0, keepdims=True)
        stat[...] = stat[...] + jnp.concatenate([s, sq], axis=0)
        xsave[blk] = x_ref[...]                                  # park tile in VMEM

    @pl.when(phase == 1)
    def _():
        st = _fold_groups(stat[...], g, c)                       # per-channel, replicated
        inv_n = 1.0 / float(n_samples)
        mean = st[0:1, :] * inv_n
        var = jnp.maximum(st[1:2, :] * inv_n - mean * mean, 0.0) # biased, clamped
        rstd = jax.lax.rsqrt(var + eps)
        scale = w_ref[...] * rstd
        shift = b_ref[...] - mean * scale
        xb = xsave[blk].astype(jnp.float32)
        o_ref[...] = (xb * scale + shift).astype(o_ref.dtype)


# --------------------------------------------------------------------------- #
# wrapper
# --------------------------------------------------------------------------- #
def batchnorm_pallas(x, weight, bias, *, eps=1e-5, row_tile=None, allow_fused=True):
    """Training-mode BatchNorm over the channel (last) axis of x: (B, L, C)."""
    B, L, C = x.shape
    N = B * L
    out_dtype = x.dtype
    isz = jnp.dtype(x.dtype).itemsize
    sub = _sublane_tile(x.dtype)
    budget = _vmem_budget_bytes()

    g = _choose_pack(C, N)
    assert N % g == 0
    Cp = g * C
    Np = N // g

    xp = x.reshape(Np, Cp)                                        # free row-major reshape
    w_c = weight.astype(jnp.float32).reshape(-1)
    b_c = bias.astype(jnp.float32).reshape(-1)
    w_p = jnp.tile(w_c, g).reshape(1, Cp)
    b_p = jnp.tile(b_c, g).reshape(1, Cp)

    def pick_rows(target_bytes, override):
        if override is not None:
            t = int(override)
        else:
            t = max(sub, target_bytes // (Cp * isz))
        t = max(sub, (t // sub) * sub)                            # dtype sublane tile
        if Np <= t:
            t = Np                                                # single full-extent block
        return t

    # ---------------- fused single-read path (two-phase pipelined grid) -------
    fused_target = min(2 * 1024 * 1024, max(512 * 1024, budget // 32))
    Tf = pick_rows(fused_target, row_tile)
    nbf = -(-Np // Tf)
    resident_bytes = nbf * Tf * Cp * isz
    tile_overhead = Tf * Cp * (4 * isz + 3 * 4) + (1 << 20)
    fused_ok = (allow_fused and (g == 1 or Cp % 128 == 0)
                and (resident_bytes + tile_overhead) <= budget)
    # TODO(synk): on v7x the fused path runs on one TensorCore (cross-step deps);
    # larger inputs automatically fall through to the fully "parallel" two-pass path.

    if fused_ok:
        row_in = pl.BlockSpec((Tf, Cp), lambda p, i: (i * (1 - p), 0))
        row_out = pl.BlockSpec((Tf, Cp), lambda p, i: (i * p, 0))
        chan = pl.BlockSpec((1, Cp), lambda p, i: (0, 0))
        yp = pl.pallas_call(
            functools.partial(_fused_kernel, n_samples=N, np_valid=Np,
                              block_rows=Tf, eps=float(eps), g=g, c=C),
            out_shape=jax.ShapeDtypeStruct((Np, Cp), out_dtype),
            grid_spec=pltpu.PrefetchScalarGridSpec(
                num_scalar_prefetch=0,
                grid=(2, nbf),
                in_specs=[row_in, chan, chan],
                out_specs=row_out,
                scratch_shapes=[pltpu.VMEM((nbf, Tf, Cp), x.dtype),
                                pltpu.VMEM((2, Cp), jnp.float32)]),
            compiler_params=pltpu.CompilerParams(
                dimension_semantics=("arbitrary", "arbitrary"),
                vmem_limit_bytes=int(budget)),
            cost_estimate=pl.CostEstimate(
                flops=int(6 * N * C), transcendentals=int(C),
                bytes_accessed=int(2 * Np * Cp * isz)),
        )(xp, w_p, b_p)
        return yp.reshape(B, L, C)

    # ---------------- two-pass path: parallel stats + lane-dense FMA ----------
    twopass_target = min(4 * 1024 * 1024, max(1 * 1024 * 1024, budget // 16))
    T = pick_rows(twopass_target, row_tile)
    nb = -(-Np // T)
    row_spec = pl.BlockSpec((T, Cp), lambda i: (i, 0))

    stats = pl.pallas_call(
        functools.partial(_stats_kernel, np_valid=Np, block_rows=T),
        out_shape=jax.ShapeDtypeStruct((nb, 2, Cp), jnp.float32),
        grid_spec=pltpu.PrefetchScalarGridSpec(
            num_scalar_prefetch=0,
            grid=(nb,),
            in_specs=[row_spec],
            out_specs=pl.BlockSpec((None, 2, Cp), lambda i: (i, 0, 0))),
        compiler_params=pltpu.CompilerParams(
            dimension_semantics=("parallel",),
            vmem_limit_bytes=int(budget)),
        cost_estimate=pl.CostEstimate(
            flops=int(3 * N * C), transcendentals=0,
            bytes_accessed=int(Np * Cp * isz)),
    )(xp)

    # Tiny cross-block + cross-group fold and scale/shift (plain XLA on (2, C)).
    stats_c = stats.sum(axis=0).reshape(2, g, C).sum(axis=1)     # (2, C)
    inv_n = 1.0 / float(N)
    mean = stats_c[0] * inv_n
    var = jnp.maximum(stats_c[1] * inv_n - mean * mean, 0.0)     # biased, clamped
    rstd = jax.lax.rsqrt(var + float(eps))
    scale_c = w_c * rstd
    shift_c = b_c - mean * scale_c
    scale = jnp.tile(scale_c, g).reshape(1, Cp)
    shift = jnp.tile(shift_c, g).reshape(1, Cp)

    chan = pl.BlockSpec((1, Cp), lambda i: (0, 0))
    yp = pl.pallas_call(
        _norm_kernel,
        out_shape=jax.ShapeDtypeStruct((Np, Cp), out_dtype),
        grid_spec=pltpu.PrefetchScalarGridSpec(
            num_scalar_prefetch=0,
            grid=(nb,),
            in_specs=[row_spec, chan, chan],
            out_specs=row_spec),
        compiler_params=pltpu.CompilerParams(
            dimension_semantics=("parallel",),
            vmem_limit_bytes=int(budget)),
        cost_estimate=pl.CostEstimate(
            flops=int(2 * N * C), transcendentals=0,
            bytes_accessed=int(2 * Np * Cp * isz)),
    )(xp, scale, shift)
    return yp.reshape(B, L, C)


# --------------------------------------------------------------------------- #
# reference
# --------------------------------------------------------------------------- #
def batchnorm_ref(x, weight, bias, *, eps=1e-5):
    xf = x.astype(jnp.float32)
    mean = jnp.mean(xf, axis=(0, 1), keepdims=True)
    var = jnp.mean((xf - mean) ** 2, axis=(0, 1), keepdims=True)  # biased
    return ((xf - mean) * jax.lax.rsqrt(var + eps) * weight + bias).astype(x.dtype)


if __name__ == "__main__":
    key = jax.random.PRNGKey(0)
    keys = jax.random.split(key, 9)

    # Case 1: module-consistent small shape (num_features = C = 32); fused,
    # lane-packed path (g = 4, Cp = 128), single block.
    B, L, C = 2, 8, 32
    x = jax.random.normal(keys[0], (B, L, C), dtype=jnp.float32)
    w = jax.random.normal(keys[1], (C,), dtype=jnp.float32) * 0.1 + 1.0
    b = jax.random.normal(keys[2], (C,), dtype=jnp.float32) * 0.1
    y = jax.block_until_ready(batchnorm_pallas(x, w, b, eps=1e-5))
    y_ref = batchnorm_ref(x, w, b, eps=1e-5)
    assert y.shape == x.shape and y.dtype == x.dtype
    assert jnp.allclose(y, y_ref, atol=2e-5, rtol=2e-5), "fused (single block) mismatch"

    # Case 2: two-pass path (forced), no exact packing (C = 48, N odd), multi-block
    # parallel grid with a masked edge block — no wrapper pad / slice.
    B2, L2, C2 = 3, 333, 48
    x2 = jax.random.normal(keys[3], (B2, L2, C2), dtype=jnp.float32)
    w2 = jax.random.normal(keys[4], (C2,), dtype=jnp.float32) * 0.1 + 1.0
    b2 = jax.random.normal(keys[5], (C2,), dtype=jnp.float32) * 0.1
    y2 = jax.block_until_ready(
        batchnorm_pallas(x2, w2, b2, eps=1e-5, row_tile=64, allow_fused=False))
    y2_ref = batchnorm_ref(x2, w2, b2, eps=1e-5)
    assert y2.shape == x2.shape and y2.dtype == x2.dtype
    assert jnp.allclose(y2, y2_ref, atol=2e-5, rtol=2e-5), "two-pass mismatch"

    # Case 3: fused two-phase pipelined path with multiple blocks, lane packing
    # (g = 2) and an edge block (roll-based group fold + tail masking).
    B3, L3, C3 = 4, 100, 64
    x3 = jax.random.normal(keys[6], (B3, L3, C3), dtype=jnp.float32)
    w3 = jax.random.normal(keys[7], (C3,), dtype=jnp.float32) * 0.1 + 1.0
    b3 = jax.random.normal(keys[8], (C3,), dtype=jnp.float32) * 0.1
    y3 = jax.block_until_ready(
        batchnorm_pallas(x3, w3, b3, eps=1e-5, row_tile=48, allow_fused=True))
    y3_ref = batchnorm_ref(x3, w3, b3, eps=1e-5)
    assert y3.shape == x3.shape and y3.dtype == x3.dtype
    assert jnp.allclose(y3, y3_ref, atol=2e-5, rtol=2e-5), "fused (multi block) mismatch"

    print("KERNEL_OK")
</pallas_src>

<mosaic_0001>
module attributes {stable_mosaic.version = 11 : i64} {
  func.func @_fused_kernel(%arg0: i32, %arg1: i32, %arg2: memref<4x128xf32, #tpu.memory_space<vmem>>, %arg3: memref<1x128xf32, #tpu.memory_space<vmem>>, %arg4: memref<1x128xf32, #tpu.memory_space<vmem>>, %arg5: memref<4x128xf32, #tpu.memory_space<vmem>>, %arg6: memref<1x4x128xf32, #tpu.memory_space<vmem>>, %arg7: memref<2x128xf32, #tpu.memory_space<vmem>>) attributes {dimension_semantics = [#tpu.dimension_semantics<arbitrary>, #tpu.dimension_semantics<arbitrary>], iteration_bounds = array<i64: 2, 1>, scalar_prefetch = 0 : i64, scratch_operands = 2 : i64, tpu.core_type = #tpu.core_type<tc>, window_params = [{transform_indices = @transform_0, window_bounds = array<i64: 4, 128>}, {pipeline_mode = #tpu.pipeline_mode<synchronous>, transform_indices = @transform_1, window_bounds = array<i64: 1, 128>}, {pipeline_mode = #tpu.pipeline_mode<synchronous>, transform_indices = @transform_2, window_bounds = array<i64: 1, 128>}, {transform_indices = @transform_3, window_bounds = array<i64: 4, 128>}]} {
    %c0_i32 = arith.constant 0 : i32
    %0 = arith.cmpi eq, %arg0, %c0_i32 : i32
    %1 = arith.extui %0 : i1 to i32
    %c0_i32_0 = arith.constant 0 : i32
    %2 = arith.cmpi ne, %1, %c0_i32_0 : i32
    scf.if %2 {
      %c0_i32_2 = arith.constant 0 : i32
      %6 = arith.cmpi eq, %arg1, %c0_i32_2 : i32
      %7 = arith.extui %6 : i1 to i32
      %c0_i32_3 = arith.constant 0 : i32
      %8 = arith.cmpi ne, %7, %c0_i32_3 : i32
      scf.if %8 {
        %cst_16 = arith.constant 0.000000e+00 : f32
        %32 = vector.broadcast %cst_16 : f32 to vector<2x128xf32>
        %c0_17 = arith.constant 0 : index
        %c0_18 = arith.constant 0 : index
        %33 = vector.load %arg7[%c0_17, %c0_18] : memref<2x128xf32, #tpu.memory_space<vmem>>, vector<2x128xf32>
        tpu.vector_store %arg7[%c0_17, %c0_18], %32 {strides = array<i32>} : memref<2x128xf32, #tpu.memory_space<vmem>>, vector<2x128xf32>,
      } else {
      }
      %c0 = arith.constant 0 : index
      %c0_4 = arith.constant 0 : index
      %9 = vector.load %arg2[%c0, %c0_4] : memref<4x128xf32, #tpu.memory_space<vmem>>, vector<4x128xf32>
      %c4_i32 = arith.constant 4 : i32
      %10 = arith.muli %arg1, %c4_i32 : i32
      %11 = tpu.iota {dimensions = array<i32: 0>} : vector<4x128xi32>
      %12 = vector.broadcast %10 : i32 to vector<4x128xi32>
      %13 = arith.addi %12, %11 : vector<4x128xi32>
      %c4_i32_5 = arith.constant 4 : i32
      %14 = vector.broadcast %c4_i32_5 : i32 to vector<4x128xi32>
      %15 = arith.cmpi slt, %13, %14 : vector<4x128xi32>
      %cst = arith.constant 0.000000e+00 : f32
      %16 = vector.broadcast %cst : f32 to vector<4x128xf32>
      %17 = arith.select %15, %9, %16 : vector<4x128xi1>, vector<4x128xf32>
      %cst_6 = arith.constant dense<0.000000e+00> : vector<128xf32>
      %18 = vector.multi_reduction <add>, %17, %cst_6 [0] : vector<4x128xf32> to vector<128xf32>
      %19 = vector.shape_cast %18 : vector<128xf32> to vector<1x128xf32>
      %20 = arith.mulf %17, %17 : vector<4x128xf32>
      %cst_7 = arith.constant dense<0.000000e+00> : vector<128xf32>
      %21 = vector.multi_reduction <add>, %20, %cst_7 [0] : vector<4x128xf32> to vector<128xf32>
      %22 = vector.shape_cast %21 : vector<128xf32> to vector<1x128xf32>
      %c0_8 = arith.constant 0 : index
      %c0_9 = arith.constant 0 : index
      %23 = vector.load %arg7[%c0_8, %c0_9] : memref<2x128xf32, #tpu.memory_space<vmem>>, vector<2x128xf32>
      %24 = tpu.concatenate %19, %22 in 0 : vector<1x128xf32>, vector<1x128xf32> -> vector<2x128xf32>
      %25 = arith.addf %23, %24 : vector<2x128xf32>
      %c0_10 = arith.constant 0 : index
      %c0_11 = arith.constant 0 : index
      %26 = vector.load %arg7[%c0_10, %c0_11] : memref<2x128xf32, #tpu.memory_space<vmem>>, vector<2x128xf32>
      tpu.vector_store %arg7[%c0_10, %c0_11], %25 {strides = array<i32>} : memref<2x128xf32, #tpu.memory_space<vmem>>, vector<2x128xf32>,
      %c0_12 = arith.constant 0 : index
      %c0_13 = arith.constant 0 : index
      %27 = vector.load %arg2[%c0_12, %c0_13] : memref<4x128xf32, #tpu.memory_space<vmem>>, vector<4x128xf32>
      %28 = arith.index_cast %arg1 : i32 to index
      %c0_14 = arith.constant 0 : index
      %c0_15 = arith.constant 0 : index
      %29 = vector.load %arg6[%28, %c0_14, %c0_15] : memref<1x4x128xf32, #tpu.memory_space<vmem>>, vector<1x4x128xf32>
      %30 = vector.shape_cast %29 : vector<1x4x128xf32> to vector<4x128xf32>
      %31 = vector.shape_cast %27 : vector<4x128xf32> to vector<1x4x128xf32>
      tpu.vector_store %arg6[%28, %c0_14, %c0_15], %31 {strides = array<i32>} : memref<1x4x128xf32, #tpu.memory_space<vmem>>, vector<1x4x128xf32>,
    } else {
    }
    %c1_i32 = arith.constant 1 : i32
    %3 = arith.cmpi eq, %arg0, %c1_i32 : i32
    %4 = arith.extui %3 : i1 to i32
    %c0_i32_1 = arith.constant 0 : i32
    %5 = arith.cmpi ne, %4, %c0_i32_1 : i32
    scf.if %5 {
      %c0 = arith.constant 0 : index
      %c0_2 = arith.constant 0 : index
      %6 = vector.load %arg7[%c0, %c0_2] : memref<2x128xf32, #tpu.memory_space<vmem>>, vector<2x128xf32>
      %c32_i32 = arith.constant 32 : i32
      %7 = tpu.dynamic_rotate %6 by %c32_i32 dim 1 : vector<2x128xf32>, i32 -> vector<2x128xf32>
      %8 = arith.addf %6, %7 : vector<2x128xf32>
      %c64_i32 = arith.constant 64 : i32
      %9 = tpu.dynamic_rotate %8 by %c64_i32 dim 1 : vector<2x128xf32>, i32 -> vector<2x128xf32>
      %10 = arith.addf %8, %9 : vector<2x128xf32>
      %11 = vector.extract_strided_slice %10 {offsets = [0, 0], sizes = [1, 128], strides = [1, 1]} : vector<2x128xf32> to vector<1x128xf32>
      %cst = arith.constant 6.250000e-02 : f32
      %12 = vector.broadcast %cst : f32 to vector<1x128xf32>
      %13 = arith.mulf %11, %12 : vector<1x128xf32>
      %14 = vector.extract_strided_slice %10 {offsets = [1, 0], sizes = [1, 128], strides = [1, 1]} : vector<2x128xf32> to vector<1x128xf32>
      %cst_3 = arith.constant 6.250000e-02 : f32
      %15 = vector.broadcast %cst_3 : f32 to vector<1x128xf32>
      %16 = arith.mulf %14, %15 : vector<1x128xf32>
      %17 = arith.mulf %13, %13 : vector<1x128xf32>
      %18 = arith.subf %16, %17 : vector<1x128xf32>
      %cst_4 = arith.constant 0.000000e+00 : f32
      %19 = vector.broadcast %cst_4 : f32 to vector<1x128xf32>
      %20 = arith.maximumf %18, %19 : vector<1x128xf32>
      %cst_5 = arith.constant 9.99999974E-6 : f32
      %21 = vector.broadcast %cst_5 : f32 to vector<1x128xf32>
      %22 = arith.addf %20, %21 : vector<1x128xf32>
      %23 = math.rsqrt %22 : vector<1x128xf32>
      %c0_6 = arith.constant 0 : index
      %c0_7 = arith.constant 0 : index
      %24 = vector.load %arg3[%c0_6, %c0_7] : memref<1x128xf32, #tpu.memory_space<vmem>>, vector<1x128xf32>
      %25 = arith.mulf %24, %23 : vector<1x128xf32>
      %c0_8 = arith.constant 0 : index
      %c0_9 = arith.constant 0 : index
      %26 = vector.load %arg4[%c0_8, %c0_9] : memref<1x128xf32, #tpu.memory_space<vmem>>, vector<1x128xf32>
      %27 = arith.mulf %13, %25 : vector<1x128xf32>
      %28 = arith.subf %26, %27 : vector<1x128xf32>
      %29 = arith.index_cast %arg1 : i32 to index
      %c0_10 = arith.constant 0 : index
      %c0_11 = arith.constant 0 : index
      %30 = vector.load %arg6[%29, %c0_10, %c0_11] : memref<1x4x128xf32, #tpu.memory_space<vmem>>, vector<1x4x128xf32>
      %31 = vector.shape_cast %30 : vector<1x4x128xf32> to vector<4x128xf32>
      %32 = vector.broadcast %25 : vector<1x128xf32> to vector<4x128xf32>
      %33 = arith.mulf %31, %32 : vector<4x128xf32>
      %34 = vector.broadcast %28 : vector<1x128xf32> to vector<4x128xf32>
      %35 = arith.addf %33, %34 : vector<4x128xf32>
      %c0_12 = arith.constant 0 : index
      %c0_13 = arith.constant 0 : index
      %36 = vector.load %arg5[%c0_12, %c0_13] : memref<4x128xf32, #tpu.memory_space<vmem>>, vector<4x128xf32>
      tpu.vector_store %arg5[%c0_12, %c0_13], %35 {strides = array<i32>} : memref<4x128xf32, #tpu.memory_space<vmem>>, vector<4x128xf32>,
    } else {
    }
    return
  }
  func.func @transform_0(%arg0: i32, %arg1: i32) -> (i32, i32) {
    %c1_i32 = arith.constant 1 : i32
    %0 = arith.subi %c1_i32, %arg0 : i32
    %1 = arith.muli %arg1, %0 : i32
    %c0_i32 = arith.constant 0 : i32
    %c0_i32_0 = arith.constant 0 : i32
    return %1, %c0_i32 : i32, i32
  }
  func.func @transform_1(%arg0: i32, %arg1: i32) -> (i32, i32) {
    %c0_i32 = arith.constant 0 : i32
    %c0_i32_0 = arith.constant 0 : i32
    %c0_i32_1 = arith.constant 0 : i32
    return %c0_i32, %c0_i32_0 : i32, i32
  }
  func.func @transform_2(%arg0: i32, %arg1: i32) -> (i32, i32) {
    %c0_i32 = arith.constant 0 : i32
    %c0_i32_0 = arith.constant 0 : i32
    %c0_i32_1 = arith.constant 0 : i32
    return %c0_i32, %c0_i32_0 : i32, i32
  }
  func.func @transform_3(%arg0: i32, %arg1: i32) -> (i32, i32) {
    %0 = arith.muli %arg1, %arg0 : i32
    %c0_i32 = arith.constant 0 : i32
    %c0_i32_0 = arith.constant 0 : i32
    return %0, %c0_i32 : i32, i32
  }
}

</mosaic_0001>

<llo_original>
// kernel: tpu_custom_call.1
$region0: #{tpu_custom_call.1}
  #allocation0 [shape = 'u32[]', space=smem, size = 0x4, offset = 0x4, fixed_abs, tag = 'smem constant byte address 0x4 - core index']
  #allocation1 [shape = 'u32[144,128]{1,0:T(1,128)}', space=vmem, size = 0x12000, scoped, tag = 'internal scratch']
  #allocation2 [shape = 'f32[1,4,128]{2,1,0:T(4,128)}', space=vmem, size = 0x800, scoped, tag = 'scratch operand']
  #allocation3 [shape = 'f32[2,128]{1,0:T(2,128)}', space=vmem, size = 0x400, scoped, tag = 'scratch operand']
  %s0 = inlined_call_operand.hbm [shape: f32[4,128], index: 0, kind: input, shape index: {}]
  %s1 = inlined_call_operand.vmem [shape: f32[1,128], index: 1, kind: input, shape index: {}]
  %s2 = inlined_call_operand.vmem [shape: f32[1,128], index: 2, kind: input, shape index: {}]
  %s3 = inlined_call_operand.hbm [shape: f32[4,128], index: 3, kind: output, shape index: {}]
  %s4 = sld [smem:[#allocation0]]
  $region61: #{tpu_custom_call.1} parent=0
    _
  %s6 = ssub.s32 1, %s4
  %s7 = scalar_select 0, %s6, %s4
  $region1: #{tpu_custom_call.1} parent=0
    #allocation4 [shape = 'u8[4096]{0}', space=vmem, size = 0x1000, scoped, tag = 'input window, operand 0']
    #allocation5 [shape = 's32[2]{0}', space=sflag, size = 0x8, scoped, tag = 'scoped memory for tpu_custom_call.1']
    #allocation6 [shape = 's32[2]{0}', space=sflag, size = 0x8, scoped, tag = 'scoped memory for tpu_custom_call.1']
    #allocation7 [shape = 'u8[4096]{0}', space=vmem, size = 0x1000, scoped, tag = 'output window, operand 0']
    %8 = vsyncpa [#allocation5], 0
    %s9 = scalar_lea.sflag [#allocation5], 1
    %10 = vsyncpa %s9, 0
    %11 = vsyncpa [#allocation6], 0
    %s12 = scalar_lea.sflag [#allocation6], 1
    %13 = vsyncpa %s12, 0
    loop: start=0, step=1, limit=4
    $region2: #{tpu_custom_call.1} parent=1 // loop_pre_header
      _
    $region3: #{tpu_custom_call.1} parent=1 // loop_header
      %s15 = sphi 0, %s19
      %p16 = scmp.ge.s32.totalorder %s15, 4
      %s22 = sphi 0, %s34
      %s23 = sphi 0, %s30
      %s24 = sphi 0, %s22
      %s25 = sphi 0, %s23
      %s26 = sphi 0, %s24
      %s27 = sphi 0, %s25
      %s41 = sphi 0, %s43
      %s44 = sphi 0, %s41
      %s45 = sphi 0, %s44
      %s61 = sphi 0, %s45
      %s65 = sphi 0, %s65
      %s67 = sphi 0, %s65
      %s68 = sphi 0, %s67
      %s82 = sphi 0, %s68
      %s86 = sphi 0, %s86
      %s88 = sphi 0, %s86
      %s89 = sphi 0, %s88
      %s103 = sphi 0, %s89
      %s111 = sphi 0, %s113
      %s114 = sphi 0, %s111
      %s115 = sphi 0, %s114
      %s131 = sphi 0, %s115
    $region4: #{tpu_custom_call.1} parent=1 // loop_header_branch
      %18 = sbr.rel (%p16) target = $region8
    $region5: #{tpu_custom_call.1} parent=1 // loop_body
      %s20 = ssub.s32 %s15, 1
      %s21 = ssub.s32 %s15, 2
      %s28 = sadd.s32 1, %s23
      %p29 = scmp.ge.s32.totalorder %s28, 1
      %s30 = scalar_select %p29, 0, %s28
      %s31 = sadd.s32 1, %s22
      %s32 = scalar_select %p29, %s31, %s22
      %p33 = scmp.ge.s32.totalorder %s32, 2
      %s34 = scalar_select %p33, 0, %s32
      %s35 = ssub.s32 1, %s22
      %s36 = smul.u32 %s23, %s35
      %s37 = ssub.s32 1, %s34
      %s38 = smul.u32 %s30, %s37
      %s39 = ssub.s32 %s36, %s38
      %p40 = scmp.eq.s32.totalorder %s39, 0
      %s42 = sadd.s32 %s41, 1
      %s43 = scalar_select %p40, %s41, %s42
      %p46 = pneg %p40
      %p47 = scmp.eq.s32.totalorder %s15, 1
      %p48 = por %p46, %p47
      %p49 = scmp.ne.s32.totalorder %s41, %s44
      %p50 = scmp.eq.s32.totalorder %s15, 0
      %p51 = por %p49, %p50
      %p52 = scmp.ne.s32.totalorder %s41, %s44
      %p53 = scmp.eq.s32.totalorder %s20, 1
      %p54 = por %p52, %p53
      %p55 = scmp.ne.s32.totalorder %s44, %s45
      %p56 = scmp.eq.s32.totalorder %s20, 0
      %p57 = por %p55, %p56
      %p58 = scmp.ne.s32.totalorder %s44, %s45
      %p59 = scmp.eq.s32.totalorder %s21, 1
      %p60 = por %p58, %p59
      %p62 = scmp.ne.s32.totalorder %s45, %s61
      %p63 = scmp.eq.s32.totalorder %s21, 0
      %p64 = por %p62, %p63
      %s66 = sadd.s32 %s65, 1
      %p69 = scmp.eq.s32.totalorder %s15, 1
      %p70 = scmp.ne.s32.totalorder %s65, %s67
      %p71 = scmp.eq.s32.totalorder %s15, 0
      %p72 = por %p70, %p71
      %p73 = scmp.ne.s32.totalorder %s65, %s67
      %p74 = scmp.eq.s32.totalorder %s20, 1
      %p75 = por %p73, %p74
      %p76 = scmp.ne.s32.totalorder %s67, %s68
      %p77 = scmp.eq.s32.totalorder %s20, 0
      %p78 = por %p76, %p77
      %p79 = scmp.ne.s32.totalorder %s67, %s68
      %p80 = scmp.eq.s32.totalorder %s21, 1
      %p81 = por %p79, %p80
      %p83 = scmp.ne.s32.totalorder %s68, %s82
      %p84 = scmp.eq.s32.totalorder %s21, 0
      %p85 = por %p83, %p84
      %s87 = sadd.s32 %s86, 1
      %p90 = scmp.eq.s32.totalorder %s15, 1
      %p91 = scmp.ne.s32.totalorder %s86, %s88
      %p92 = scmp.eq.s32.totalorder %s15, 0
      %p93 = por %p91, %p92
      %p94 = scmp.ne.s32.totalorder %s86, %s88
      %p95 = scmp.eq.s32.totalorder %s20, 1
      %p96 = por %p94, %p95
      %p97 = scmp.ne.s32.totalorder %s88, %s89
      %p98 = scmp.eq.s32.totalorder %s20, 0
      %p99 = por %p97, %p98
      %p100 = scmp.ne.s32.totalorder %s88, %s89
      %p101 = scmp.eq.s32.totalorder %s21, 1
      %p102 = por %p100, %p101
      %p104 = scmp.ne.s32.totalorder %s89, %s103
      %p105 = scmp.eq.s32.totalorder %s21, 0
      %p106 = por %p104, %p105
      %s107 = smul.u32 %s23, %s22
      %s108 = smul.u32 %s30, %s34
      %s109 = ssub.s32 %s107, %s108
      %p110 = scmp.eq.s32.totalorder %s109, 0
      %s112 = sadd.s32 %s111, 1
      %s113 = scalar_select %p110, %s111, %s112
      %p116 = pneg %p110
      %p117 = scmp.eq.s32.totalorder %s15, 1
      %p118 = por %p116, %p117
      %p119 = scmp.ne.s32.totalorder %s111, %s114
      %p120 = scmp.eq.s32.totalorder %s15, 0
      %p121 = por %p119, %p120
      %p122 = scmp.ne.s32.totalorder %s111, %s114
      %p123 = scmp.eq.s32.totalorder %s20, 1
      %p124 = por %p122, %p123
      %p125 = scmp.ne.s32.totalorder %s114, %s115
      %p126 = scmp.eq.s32.totalorder %s20, 0
      %p127 = por %p125, %p126
      %p128 = scmp.ne.s32.totalorder %s114, %s115
      %p129 = scmp.eq.s32.totalorder %s21, 1
      %p130 = por %p128, %p129
      %p132 = scmp.ne.s32.totalorder %s115, %s131
      %p133 = scmp.eq.s32.totalorder %s21, 0
      %p134 = por %p132, %p133
      %p135 = scmp.le.s32.totalorder 1, %s15
      %p136 = scmp.lt.s32.totalorder %s15, 3
      %p137 = pnand %p135, %p136
      %p138 = pneg %p137
      // Predicated region
      $region9: #{tpu_custom_call.1} parent=5 // pred_check
        _
      $region10: #{tpu_custom_call.1} parent=5 // pred_check_branch
        %140 = sbr.rel (%p137) target = $region12
      $region11: #{tpu_custom_call.1} parent=5 // pred_region
        %s141 = ssub.s32 %s15, 1
        // Predicated region
        $region13: #{tpu_custom_call.1} parent=11 // pred_check
          %p142 = pneg %p78
        $region14: #{tpu_custom_call.1} parent=11 // pred_check_branch
          %144 = sbr.rel (%p142) target = $region16
        $region15: #{tpu_custom_call.1} parent=11 // pred_region
          _
        $region16: #{tpu_custom_call.1} parent=11 // pred_fallthru
          _
        // Predicated region
        $region17: #{tpu_custom_call.1} parent=11 // pred_check
          %p145 = pneg %p99
        $region18: #{tpu_custom_call.1} parent=11 // pred_check_branch
          %147 = sbr.rel (%p145) target = $region20
        $region19: #{tpu_custom_call.1} parent=11 // pred_region
          _
        $region20: #{tpu_custom_call.1} parent=11 // pred_fallthru
          _
      $region12: #{tpu_custom_call.1} parent=5 // pred_fallthru
        _
      %p148 = scmp.lt.s32.totalorder %s15, 2
      // Predicated region
      $region21: #{tpu_custom_call.1} parent=5 // pred_check
        %p149 = pneg %p148
      $region22: #{tpu_custom_call.1} parent=5 // pred_check_branch
        %151 = sbr.rel (%p149) target = $region24
      $region23: #{tpu_custom_call.1} parent=5 // pred_region
        // Predicated region
        $region25: #{tpu_custom_call.1} parent=23 // pred_check
          %p152 = pneg %p51
        $region26: #{tpu_custom_call.1} parent=23 // pred_check_branch
          %154 = sbr.rel (%p152) target = $region28
        $region27: #{tpu_custom_call.1} parent=23 // pred_region
          %s155 = sand.u32 %s41, 1
          %s156 = scalar_lea.sflag [#allocation5], %s155
          %s157 = sand.u32 %s41, 1
          %s158 = smul.addr %s157, 4
          %s159 = scalar_lea.vmem [#allocation4], %s158
          %s160 = ssub.s32 1, %s22
          %s161 = smul.u32 %s23, %s160
          %s163 = ssub.s32 64, 64
          %164 = vsyncadd %s156, %s163
          %s165 = smul.addr %s161, 64
          %s166 = scalar_lea.hbm %s0, %s165
          %s168 = sshll.u32 %s159, 4
          %s169 = int_to_ptr.vmem [resolvable:$true] %s168
          %171 = dma.hbm_to_vmem [thread:$0]  %s166, 64, %s169, %s156
        $region28: #{tpu_custom_call.1} parent=23 // pred_fallthru
          _
      $region24: #{tpu_custom_call.1} parent=5 // pred_fallthru
        _
      %p172 = scmp.le.s32.totalorder 1, %s15
      %p173 = scmp.lt.s32.totalorder %s15, 3
      %p174 = pnand %p172, %p173
      %p175 = pneg %p174
      // Predicated region
      $region29: #{tpu_custom_call.1} parent=5 // pred_check
        _
      $region30: #{tpu_custom_call.1} parent=5 // pred_check_branch
        %177 = sbr.rel (%p174) target = $region32
      $region31: #{tpu_custom_call.1} parent=5 // pred_region
        %s178 = ssub.s32 %s15, 1
        %s179 = sand.u32 %s44, 1
        %s180 = scalar_lea.sflag [#allocation5], %s179
        %s181 = sand.u32 %s44, 1
        %s182 = smul.addr %s181, 4
        %s183 = scalar_lea.vmem [#allocation4], %s182
        // Predicated region
        $region33: #{tpu_custom_call.1} parent=31 // pred_check
          %p184 = pneg %p57
        $region34: #{tpu_custom_call.1} parent=31 // pred_check_branch
          %186 = sbr.rel (%p184) target = $region36
        $region35: #{tpu_custom_call.1} parent=31 // pred_region
          %187 = dma.done %s180, 64
        $region36: #{tpu_custom_call.1} parent=31 // pred_fallthru
          _
        %s188 = sand.u32 %s44, 1
        %s189 = scalar_lea.sflag [#allocation5], %s188
        %s190 = sand.u32 %s44, 1
        %s191 = smul.addr %s190, 4
        %s192 = scalar_lea.vmem [#allocation4], %s191
        %p193 = pneg %p57
        %p194 = pneg %p54
        %p195 = pneg %p78
        %p196 = pneg %p75
        %p197 = pneg %p99
        %p198 = pneg %p96
        %p199 = pneg %p127
        %p200 = pneg %p124
        %s201 = sand.u32 %s114, 1
        %s202 = scalar_lea.sflag [#allocation6], %s201
        %s203 = sand.u32 %s114, 1
        %s204 = smul.addr %s203, 4
        %s205 = scalar_lea.vmem [#allocation7], %s204
        %s206 = ssub.s32 1, %s24
        %s207 = smul.u32 %s25, %s206
        %s208 = smul.u32 %s25, %s24
        %p209 = scmp.eq.s32.totalorder %s24, 0
        // Predicated region
        $region37: #{tpu_custom_call.1} parent=31 // pred_check
          %p210 = pneg %p209
        $region38: #{tpu_custom_call.1} parent=31 // pred_check_branch
          %212 = sbr.rel (%p210) target = $region40
        $region39: #{tpu_custom_call.1} parent=31 // pred_region
          %p213 = scmp.eq.s32.totalorder %s25, 0
          // Predicated region
          $region41: #{tpu_custom_call.1} parent=39 // pred_check
            %p214 = pneg %p213
          $region42: #{tpu_custom_call.1} parent=39 // pred_check_branch
            %216 = sbr.rel (%p214) target = $region44
          $region43: #{tpu_custom_call.1} parent=39 // pred_region
            %217 = vst [vmem:[#allocation3] sm:$0x3] 0.0
          $region44: #{tpu_custom_call.1} parent=39 // pred_fallthru
            _
          %v218 = vld [vmem:[%s183] sm:$0xf]
          %s219 = smul.u32 %s25, 4
          %v220 = vlaneseq
          %v221 = vshrl.u32 %v220, 7
          %v222 = vstv %s219
          %v223 = vadd.s32 %v222, %v221
          %vm224 = vcmp.lt.s32.totalorder %v223, 4
          %v225 = vsel %vm224, %v218, 0.0
          %vm226 = vcmask 1043456
          %v227 = vsel %vm226, %v225, 0.0
          %v228 = vrot.slane %v227, 4
          %v229 = vadd.f32 %v227, %v228
          %v230 = vrot.slane %v229, 2
          %v231 = vadd.f32 %v229, %v230
          %v232 = vrot.slane %v231, 1
          %v233 = vadd.f32 %v231, %v232
          %v234 = vmul.f32 %v225, %v225
          %v235 = vsel %vm226, %v234, 0.0
          %v236 = vrot.slane %v235, 4
          %v237 = vadd.f32 %v235, %v236
          %v238 = vrot.slane %v237, 2
          %v239 = vadd.f32 %v237, %v238
          %v240 = vrot.slane %v239, 1
          %v241 = vadd.f32 %v239, %v240
          %v242 = vld [vmem:[#allocation3] sm:$0x3]
          %vm243 = vcmask 1040384
          %v244 = vsel %vm243, %v233, %v241
          %v245 = vadd.f32 %v242, %v244
          %246 = vst [vmem:[#allocation3] sm:$0x3] %v245
          %v247 = vld [vmem:[%s183] sm:$0xf]
          %s248 = scalar_lea.vmem [#allocation2], %s219
          %249 = vst [vmem:[%s248] sm:$0xf] %v247
        $region40: #{tpu_custom_call.1} parent=31 // pred_fallthru
          _
        %p250 = scmp.eq.s32.totalorder %s24, 1
        // Predicated region
        $region45: #{tpu_custom_call.1} parent=31 // pred_check
          %p251 = pneg %p250
        $region46: #{tpu_custom_call.1} parent=31 // pred_check_branch
          %253 = sbr.rel (%p251) target = $region48
        $region47: #{tpu_custom_call.1} parent=31 // pred_region
          %v254 = vld [vmem:[#allocation3] sm:$0x3]
          %255 = vrot.lane.b32.xlu0 %v254, 32
          %v256 = vpop.permute.xlu0 %255
          %v257 = vadd.f32 %v254, %v256
          %258 = vrot.lane.b32.xlu0 %v257, 64
          %v259 = vpop.permute.xlu0 %258
          %v260 = vadd.f32 %v257, %v259
          %v261 = vmul.f32 %v260, 0.0625
          %v262 = vmul.f32 %v261, %v261
          %v264 = vrot.slane %v262, 7
          %v266 = vsub.f32 %v261, %v264
          %v267 = vmax.f32 %v266, 0.0
          %v268 = vadd.f32 %v267, 1e-05
          %v269 = vrsqrt.pop %v268
          %v270 = vld [vmem:[%s1] sm:$0x1]
          %v273 = vunpack.c.l.s4 1966171168
          %v274 = vunpack.c.0.s8 %v273
          %v275 = vlaneseq
          %v276 = vshrl.u32 %v275, 7
          %v277 = vsub.s32 %v274, %v276
          %v278 = vrot.slane %v269, %v277
          %v279 = vcombine.high %v278, %v278
          %v281 = vunpack.c.l.s4 1966171168
          %v282 = vunpack.c.0.s8 %v281
          %v283 = vlaneseq
          %v284 = vshrl.u32 %v283, 7
          %v285 = vsub.s32 %v282, %v284
          %v286 = vrot.slane %v279, %v285
          %v288 = vmul.f32 %v270, %v286
          %v289 = vld [vmem:[%s2] sm:$0x1]
          %v290 = vmul.f32 %v261, %v288
          %v291 = vsub.f32 %v289, %v290
          %s292 = smul.u32 %s25, 4
          %s293 = scalar_lea.vmem [#allocation2], %s292
          %v294 = vld [vmem:[%s293] sm:$0xf]
          %v296 = vlaneseq
          %v297 = vshrl.u32 %v296, 7
          %v298 = vsub.s32 0, %v297
          %v299 = vrot.slane %v288, %v298
          %v301 = vmul.f32 %v294, %v299
          %v303 = vlaneseq
          %v304 = vshrl.u32 %v303, 7
          %v305 = vsub.s32 0, %v304
          %v306 = vrot.slane %v291, %v305
          %v308 = vadd.f32 %v301, %v306
          %309 = vst [vmem:[%s205] sm:$0xf] %v308
        $region48: #{tpu_custom_call.1} parent=31 // pred_fallthru
          _
        %s310 = sand.u32 %s114, 1
        %s311 = scalar_lea.sflag [#allocation6], %s310
        %s312 = sand.u32 %s114, 1
        %s313 = smul.addr %s312, 4
        %s314 = scalar_lea.vmem [#allocation7], %s313
        // Predicated region
        $region49: #{tpu_custom_call.1} parent=31 // pred_check
          %p315 = pneg %p124
        $region50: #{tpu_custom_call.1} parent=31 // pred_check_branch
          %317 = sbr.rel (%p315) target = $region52
        $region51: #{tpu_custom_call.1} parent=31 // pred_region
          %s318 = smul.u32 %s25, %s24
          %s320 = ssub.s32 64, 64
          %321 = vsyncadd %s311, %s320
          %s322 = smul.addr %s318, 64
          %s323 = scalar_lea.hbm %s3, %s322
          %s325 = sshll.u32 %s314, 4
          %s326 = int_to_ptr.vmem [resolvable:$true] %s325
          %328 = dma.vmem_to_hbm [thread:$0]  %s326, 64, %s323, %s311
        $region52: #{tpu_custom_call.1} parent=31 // pred_fallthru
          _
      $region32: #{tpu_custom_call.1} parent=5 // pred_fallthru
        _
      %p329 = scmp.le.s32.totalorder 2, %s15
      // Predicated region
      $region53: #{tpu_custom_call.1} parent=5 // pred_check
        %p330 = pneg %p329
      $region54: #{tpu_custom_call.1} parent=5 // pred_check_branch
        %332 = sbr.rel (%p330) target = $region56
      $region55: #{tpu_custom_call.1} parent=5 // pred_region
        %s333 = ssub.s32 %s15, 2
        // Predicated region
        $region57: #{tpu_custom_call.1} parent=55 // pred_check
          %p334 = pneg %p130
        $region58: #{tpu_custom_call.1} parent=55 // pred_check_branch
          %336 = sbr.rel (%p334) target = $region60
        $region59: #{tpu_custom_call.1} parent=55 // pred_region
          %s337 = sand.u32 %s115, 1
          %s338 = scalar_lea.sflag [#allocation6], %s337
          %s339 = sand.u32 %s115, 1
          %s340 = smul.addr %s339, 4
          %s341 = scalar_lea.vmem [#allocation7], %s340
          %342 = dma.done %s338, 64
        $region60: #{tpu_custom_call.1} parent=55 // pred_fallthru
          _
      $region56: #{tpu_custom_call.1} parent=5 // pred_fallthru
        _
    $region6: #{tpu_custom_call.1} parent=1 // loop_footer
      %s19 = sadd.s32 1, %s15
    $region7: #{tpu_custom_call.1} parent=1 // loop_footer_branch
      %14 = sbr.rel target = $region3
    $region8: #{tpu_custom_call.1} parent=1 // loop_exit
      _
    %343 = vsyncpa [#allocation5], 1
    %s344 = scalar_lea.sflag [#allocation5], 1
    %345 = vsyncpa %s344, 1
    %346 = vsyncpa [#allocation6], 1
    %s347 = scalar_lea.sflag [#allocation6], 1
    %348 = vsyncpa %s347, 1

</llo_original>
